<compile_context>
chip_gen: v5e
topology: v5e:2x2
jax: 0.10.0
libtpu: 0.0.40
codegen_flags: <defaults>
</compile_context>

<pallas_src>
import functools

import jax
import jax.numpy as jnp
from jax.experimental import pallas as pl
from jax.experimental.pallas import tpu as pltpu

BN_EPS = 1e-5


def _round_up(x, m):
    return ((x + m - 1) // m) * m


# --------------------------------------------------------------------------
# Pass 1: BN statistics (sum / sum-of-squares accumulated across batch tiles)
# --------------------------------------------------------------------------
def _stats_kernel(x_ref, w1_ref, b1_ref, gamma_ref, beta_ref,
                  stats_ref, sum_ref, sq_ref, *, valid_rows, block_b):
    i = pl.program_id(0)

    @pl.when(i == 0)
    def _init():
        sum_ref[...] = jnp.zeros_like(sum_ref)
        sq_ref[...] = jnp.zeros_like(sq_ref)

    # Linear1 on this batch tile (bf16 MXU, f32 accumulate).
    y1 = jnp.dot(x_ref[...], w1_ref[...], preferred_element_type=jnp.float32)
    y1 = y1 + b1_ref[...]

    # Mask rows that are pure batch padding so they do not pollute the stats.
    row = i * block_b + jax.lax.broadcasted_iota(jnp.int32, (block_b, 1), 0)
    y1 = y1 * (row < valid_rows).astype(jnp.float32)

    sum_ref[...] += jnp.sum(y1, axis=0, keepdims=True)
    sq_ref[...] += jnp.sum(y1 * y1, axis=0, keepdims=True)

    @pl.when(i == pl.num_programs(0) - 1)
    def _finalize():
        inv_n = 1.0 / float(valid_rows)
        mean = sum_ref[...] * inv_n
        var = jnp.maximum(sq_ref[...] * inv_n - mean * mean, 0.0)  # biased var
        rstd = jax.lax.rsqrt(var + BN_EPS)                         # EUP slot
        scale = gamma_ref[...] * rstd
        shift = beta_ref[...] - mean * scale
        stats_ref[0:1, :] = scale
        stats_ref[1:2, :] = shift


# --------------------------------------------------------------------------
# Pass 2: fused (Linear1 | shortcut) matmul, BN apply, ReLU, Linear2, add
# --------------------------------------------------------------------------
def _apply_kernel(x_ref, wcat_ref, bcat_ref, stats_ref, w2_ref, b2_ref,
                  o_ref, *, n_pad):
    # One MXU matmul for both x-sharing linears: [W1 | Wshortcut].
    ycat = jnp.dot(x_ref[...], wcat_ref[...], preferred_element_type=jnp.float32)
    ycat = ycat + bcat_ref[...]
    y1 = ycat[:, :n_pad]          # lane-aligned static split (n_pad % 128 == 0)
    sc = ycat[:, n_pad:]

    # BN apply (folded scale/shift) + ReLU, all f32 on the VPU.
    y_bn = y1 * stats_ref[0:1, :] + stats_ref[1:2, :]
    y_relu = jnp.maximum(y_bn, 0.0)

    # Linear2 (bf16 MXU, f32 accumulate).  TODO(synk): for very large n_units
    # (w2 no longer VMEM-resident on v7x's 64 MiB) add a K-tiled inner loop.
    y2 = jnp.dot(y_relu.astype(w2_ref.dtype), w2_ref[...],
                 preferred_element_type=jnp.float32) + b2_ref[...]

    o_ref[...] = (y2 + sc).astype(o_ref.dtype)


# --------------------------------------------------------------------------
# Wrapper
# --------------------------------------------------------------------------
def mifcnet_forward(x, params, *, block_b=None):
    """x: (B, n_input) f32.  params: output of prepare_params()."""
    n_input = params["n_input"]
    n_units = params["n_units"]
    k_pad = params["k_pad"]
    n_pad = params["n_pad"]
    cdt = params["compute_dtype"]

    B = x.shape[0]
    if block_b is None:
        block_b = min(512, _round_up(B, 8))   # production default 256-512
    block_b = max(8, _round_up(block_b, 8))
    b_pad = _round_up(max(B, block_b), block_b)
    grid = (b_pad // block_b,)

    # Zero-pad batch rows and K lanes; cast matmul LHS to bf16 once here.
    x_pad = jnp.zeros((b_pad, k_pad), cdt).at[:B, :n_input].set(x.astype(cdt))

    itemsize = jnp.dtype(cdt).itemsize
    w_bytes = (k_pad * n_pad + 2 * k_pad * n_pad + n_pad * n_pad) * itemsize
    tile_bytes = 2 * (block_b * k_pad * itemsize + block_b * n_pad * 4)
    need = 2 * w_bytes + tile_bytes + 8 * n_pad * 4
    vmem_limit = int(min(max(2 * need + (2 << 20), 32 << 20), 100 << 20))

    # ---- pass 1: BN statistics ------------------------------------------
    stats = pl.pallas_call(
        functools.partial(_stats_kernel, valid_rows=B, block_b=block_b),
        out_shape=jax.ShapeDtypeStruct((2, n_pad), jnp.float32),
        grid=grid,
        in_specs=[
            pl.BlockSpec((block_b, k_pad), lambda i: (i, 0)),   # x tile streams
            pl.BlockSpec((k_pad, n_pad), lambda i: (0, 0)),     # W1 resident
            pl.BlockSpec((1, n_pad), lambda i: (0, 0)),         # b1
            pl.BlockSpec((1, n_pad), lambda i: (0, 0)),         # gamma
            pl.BlockSpec((1, n_pad), lambda i: (0, 0)),         # beta
        ],
        out_specs=pl.BlockSpec((2, n_pad), lambda i: (0, 0)),   # resident acc
        scratch_shapes=[pltpu.VMEM((1, n_pad), jnp.float32),
                        pltpu.VMEM((1, n_pad), jnp.float32)],
        compiler_params=pltpu.CompilerParams(
            dimension_semantics=("arbitrary",),                 # reduction axis
            vmem_limit_bytes=vmem_limit),
        cost_estimate=pl.CostEstimate(
            flops=2 * b_pad * k_pad * n_pad,
            transcendentals=n_pad,
            bytes_accessed=b_pad * k_pad * itemsize
            + k_pad * n_pad * itemsize + 5 * n_pad * 4),
    )(x_pad, params["w1_pad"], params["b1_pad"],
      params["gamma_pad"], params["beta_pad"])

    # ---- pass 2: normalize + matmuls + shortcut -------------------------
    out_pad = pl.pallas_call(
        functools.partial(_apply_kernel, n_pad=n_pad),
        out_shape=jax.ShapeDtypeStruct((b_pad, n_pad), jnp.float32),
        grid=grid,
        in_specs=[
            pl.BlockSpec((block_b, k_pad), lambda i: (i, 0)),    # x tile streams
            pl.BlockSpec((k_pad, 2 * n_pad), lambda i: (0, 0)),  # [W1|Wsc] resident
            pl.BlockSpec((1, 2 * n_pad), lambda i: (0, 0)),      # [b1|bsc]
            pl.BlockSpec((2, n_pad), lambda i: (0, 0)),          # scale/shift
            pl.BlockSpec((n_pad, n_pad), lambda i: (0, 0)),      # W2 resident
            pl.BlockSpec((1, n_pad), lambda i: (0, 0)),          # b2
        ],
        out_specs=pl.BlockSpec((block_b, n_pad), lambda i: (i, 0)),
        compiler_params=pltpu.CompilerParams(
            dimension_semantics=("parallel",),                   # megacore on v7x
            vmem_limit_bytes=vmem_limit),
        cost_estimate=pl.CostEstimate(
            flops=2 * b_pad * (2 * k_pad * n_pad + n_pad * n_pad),
            transcendentals=0,
            bytes_accessed=b_pad * k_pad * itemsize
            + (2 * k_pad * n_pad + n_pad * n_pad) * itemsize
            + b_pad * n_pad * 4),
    )(x_pad, params["wcat_pad"], params["bcat_pad"], stats,
      params["w2_pad"], params["b2_pad"])

    return out_pad[:B, :n_units]


# --------------------------------------------------------------------------
# Parameter construction (mirrors MIFCNet.__init__) and packing for the kernel
# --------------------------------------------------------------------------
def init_raw_params(key, n_input, n_units):
    assert n_units >= n_input
    k1, k2, k3, k4, k5, k6 = jax.random.split(key, 6)

    def torch_linear_init(kw, kb, out_f, in_f):
        bound = 1.0 / jnp.sqrt(in_f)
        w = jax.random.uniform(kw, (out_f, in_f), jnp.float32, -bound, bound)
        b = jax.random.uniform(kb, (out_f,), jnp.float32, -bound, bound)
        return w, b

    w1, b1 = torch_linear_init(k1, k2, n_units, n_input)
    w2, b2 = torch_linear_init(k3, k4, n_units, n_units)

    # linear_shortcut: uniform(-0.01, 0.01), then diagonal filled with 1.0
    ws = jax.random.uniform(k5, (n_units, n_input), jnp.float32, -0.01, 0.01)
    eye_mask = jnp.zeros((n_units, n_input), dtype=bool).at[
        jnp.arange(n_input), jnp.arange(n_input)].set(True)
    ws = jnp.where(eye_mask, 1.0, ws)
    bound_s = 1.0 / jnp.sqrt(n_input)
    bs = jax.random.uniform(k6, (n_units,), jnp.float32, -bound_s, bound_s)

    gamma = jnp.ones((n_units,), jnp.float32)
    beta = jnp.zeros((n_units,), jnp.float32)
    return dict(w1=w1, b1=b1, w2=w2, b2=b2, ws=ws, bs=bs, gamma=gamma, beta=beta)


def prepare_params(raw, n_input, n_units, compute_dtype=jnp.bfloat16):
    """Pad lane dims to 128, pre-transpose for x@W, cast weights to bf16."""
    k_pad = _round_up(n_input, 128)
    n_pad = _round_up(n_units, 128)

    def pad_w(w_t, rows, cols):  # w_t: (in, out) row-major
        out = jnp.zeros((rows, cols), jnp.float32)
        return out.at[:w_t.shape[0], :w_t.shape[1]].set(w_t).astype(compute_dtype)

    def pad_v(v, n):
        return jnp.zeros((1, n), jnp.float32).at[0, :v.shape[0]].set(v)

    w1_pad = pad_w(raw["w1"].T, k_pad, n_pad)
    ws_pad = pad_w(raw["ws"].T, k_pad, n_pad)
    w2_pad = pad_w(raw["w2"].T, n_pad, n_pad)   # padded rows zero => no leakage
    b1_pad = pad_v(raw["b1"], n_pad)
    bs_pad = pad_v(raw["bs"], n_pad)
    return dict(
        w1_pad=w1_pad,
        wcat_pad=jnp.concatenate([w1_pad, ws_pad], axis=1),
        bcat_pad=jnp.concatenate([b1_pad, bs_pad], axis=1),
        w2_pad=w2_pad,
        b1_pad=b1_pad,
        b2_pad=pad_v(raw["b2"], n_pad),
        gamma_pad=pad_v(raw["gamma"], n_pad),
        beta_pad=pad_v(raw["beta"], n_pad),
        n_input=n_input, n_units=n_units, k_pad=k_pad, n_pad=n_pad,
        compute_dtype=compute_dtype,
    )


def mifcnet_ref(x, raw):
    """Pure-JAX f32 reference (training-mode BN, biased variance)."""
    y1 = x @ raw["w1"].T + raw["b1"]
    mean = jnp.mean(y1, axis=0, keepdims=True)
    var = jnp.mean((y1 - mean) ** 2, axis=0, keepdims=True)
    y_bn = (y1 - mean) / jnp.sqrt(var + BN_EPS) * raw["gamma"] + raw["beta"]
    y2 = jnp.maximum(y_bn, 0.0) @ raw["w2"].T + raw["b2"]
    sc = x @ raw["ws"].T + raw["bs"]
    return y2 + sc


if __name__ == "__main__":
    key = jax.random.PRNGKey(0)
    kx, kp = jax.random.split(key)

    # Small shapes; block_b=8 forces a 3-step batch grid (with 4 padded rows)
    # so the multi-tile BN accumulation + row-masking path is exercised.
    B, n_input, n_units = 20, 16, 32
    x = jax.random.normal(kx, (B, n_input), dtype=jnp.float32)
    raw = init_raw_params(kp, n_input, n_units)
    params = prepare_params(raw, n_input, n_units, compute_dtype=jnp.bfloat16)

    out = mifcnet_forward(x, params, block_b=8)
    out = jax.block_until_ready(out)

    ref = mifcnet_ref(x, raw)
    assert out.shape == (B, n_units)
    # Tolerance accounts for bf16 matmul operands (f32 accumulation).
    err = float(jnp.max(jnp.abs(out - ref)))
    assert jnp.allclose(out, ref, atol=5e-2, rtol=5e-2), f"mismatch, max|err|={err}"

    print("KERNEL_OK")
</pallas_src>

<mosaic_0001>
module attributes {stable_mosaic.version = 11 : i64} {
  func.func @_stats_kernel(%arg0: i32, %arg1: memref<8x128xbf16, #tpu.memory_space<vmem>>, %arg2: memref<128x128xbf16, #tpu.memory_space<vmem>>, %arg3: memref<1x128xf32, #tpu.memory_space<vmem>>, %arg4: memref<1x128xf32, #tpu.memory_space<vmem>>, %arg5: memref<1x128xf32, #tpu.memory_space<vmem>>, %arg6: memref<2x128xf32, #tpu.memory_space<vmem>>, %arg7: memref<1x128xf32, #tpu.memory_space<vmem>>, %arg8: memref<1x128xf32, #tpu.memory_space<vmem>>) attributes {dimension_semantics = [#tpu.dimension_semantics<arbitrary>], iteration_bounds = array<i64: 3>, scalar_prefetch = 0 : i64, scratch_operands = 2 : i64, tpu.core_type = #tpu.core_type<tc>, window_params = [{transform_indices = @transform_0, window_bounds = array<i64: 8, 128>}, {pipeline_mode = #tpu.pipeline_mode<synchronous>, transform_indices = @transform_1, window_bounds = array<i64: 128, 128>}, {pipeline_mode = #tpu.pipeline_mode<synchronous>, transform_indices = @transform_2, window_bounds = array<i64: 1, 128>}, {pipeline_mode = #tpu.pipeline_mode<synchronous>, transform_indices = @transform_3, window_bounds = array<i64: 1, 128>}, {pipeline_mode = #tpu.pipeline_mode<synchronous>, transform_indices = @transform_4, window_bounds = array<i64: 1, 128>}, {pipeline_mode = #tpu.pipeline_mode<synchronous>, transform_indices = @transform_5, window_bounds = array<i64: 2, 128>}]} {
    %c0_i32 = arith.constant 0 : i32
    %0 = arith.cmpi eq, %arg0, %c0_i32 : i32
    %1 = arith.extui %0 : i1 to i32
    %c0_i32_0 = arith.constant 0 : i32
    %2 = arith.cmpi ne, %1, %c0_i32_0 : i32
    scf.if %2 {
      %cst_17 = arith.constant 0.000000e+00 : f32
      %33 = vector.broadcast %cst_17 : f32 to vector<1x128xf32>
      %c0_18 = arith.constant 0 : index
      %c0_19 = arith.constant 0 : index
      %34 = vector.load %arg7[%c0_18, %c0_19] : memref<1x128xf32, #tpu.memory_space<vmem>>, vector<1x128xf32>
      tpu.vector_store %arg7[%c0_18, %c0_19], %33 {strides = array<i32>} : memref<1x128xf32, #tpu.memory_space<vmem>>, vector<1x128xf32>,
      %cst_20 = arith.constant 0.000000e+00 : f32
      %35 = vector.broadcast %cst_20 : f32 to vector<1x128xf32>
      %c0_21 = arith.constant 0 : index
      %c0_22 = arith.constant 0 : index
      %36 = vector.load %arg8[%c0_21, %c0_22] : memref<1x128xf32, #tpu.memory_space<vmem>>, vector<1x128xf32>
      tpu.vector_store %arg8[%c0_21, %c0_22], %35 {strides = array<i32>} : memref<1x128xf32, #tpu.memory_space<vmem>>, vector<1x128xf32>,
    } else {
    }
    %c0 = arith.constant 0 : index
    %c0_1 = arith.constant 0 : index
    %3 = vector.load %arg1[%c0, %c0_1] : memref<8x128xbf16, #tpu.memory_space<vmem>>, vector<8x128xbf16>
    %c0_2 = arith.constant 0 : index
    %c0_3 = arith.constant 0 : index
    %4 = vector.load %arg2[%c0_2, %c0_3] : memref<128x128xbf16, #tpu.memory_space<vmem>>, vector<128x128xbf16>
    %cst = arith.constant dense<0.000000e+00> : vector<8x128xf32>
    %5 = tpu.matmul %3, %4, %cst {dimension_numbers = #tpu.dot_dimension_numbers<[1], [0], [0], [1], [0, 0, 1, 1], [], []>} : vector<8x128xbf16>, vector<128x128xbf16>, vector<8x128xf32> -> vector<8x128xf32>
    %c0_4 = arith.constant 0 : index
    %c0_5 = arith.constant 0 : index
    %6 = vector.load %arg3[%c0_4, %c0_5] : memref<1x128xf32, #tpu.memory_space<vmem>>, vector<1x128xf32>
    %7 = vector.broadcast %6 : vector<1x128xf32> to vector<8x128xf32>
    %8 = arith.addf %5, %7 : vector<8x128xf32>
    %c8_i32 = arith.constant 8 : i32
    %9 = arith.muli %arg0, %c8_i32 : i32
    %10 = tpu.iota {dimensions = array<i32: 0>} : vector<8x1xi32>
    %11 = vector.broadcast %9 : i32 to vector<8x1xi32>
    %12 = arith.addi %11, %10 : vector<8x1xi32>
    %c20_i32 = arith.constant 20 : i32
    %13 = vector.broadcast %c20_i32 : i32 to vector<8x1xi32>
    %14 = arith.cmpi slt, %12, %13 : vector<8x1xi32>
    %15 = arith.extui %14 : vector<8x1xi1> to vector<8x1xi32>
    %16 = arith.sitofp %15 : vector<8x1xi32> to vector<8x1xf32>
    %17 = vector.broadcast %16 : vector<8x1xf32> to vector<8x128xf32>
    %18 = arith.mulf %8, %17 : vector<8x128xf32>
    %c0_6 = arith.constant 0 : index
    %c0_7 = arith.constant 0 : index
    %19 = vector.load %arg7[%c0_6, %c0_7] : memref<1x128xf32, #tpu.memory_space<vmem>>, vector<1x128xf32>
    %cst_8 = arith.constant dense<0.000000e+00> : vector<128xf32>
    %20 = vector.multi_reduction <add>, %18, %cst_8 [0] : vector<8x128xf32> to vector<128xf32>
    %21 = vector.shape_cast %20 : vector<128xf32> to vector<1x128xf32>
    %22 = arith.addf %19, %21 : vector<1x128xf32>
    %c0_9 = arith.constant 0 : index
    %c0_10 = arith.constant 0 : index
    %23 = vector.load %arg7[%c0_9, %c0_10] : memref<1x128xf32, #tpu.memory_space<vmem>>, vector<1x128xf32>
    tpu.vector_store %arg7[%c0_9, %c0_10], %22 {strides = array<i32>} : memref<1x128xf32, #tpu.memory_space<vmem>>, vector<1x128xf32>,
    %c0_11 = arith.constant 0 : index
    %c0_12 = arith.constant 0 : index
    %24 = vector.load %arg8[%c0_11, %c0_12] : memref<1x128xf32, #tpu.memory_space<vmem>>, vector<1x128xf32>
    %25 = arith.mulf %18, %18 : vector<8x128xf32>
    %cst_13 = arith.constant dense<0.000000e+00> : vector<128xf32>
    %26 = vector.multi_reduction <add>, %25, %cst_13 [0] : vector<8x128xf32> to vector<128xf32>
    %27 = vector.shape_cast %26 : vector<128xf32> to vector<1x128xf32>
    %28 = arith.addf %24, %27 : vector<1x128xf32>
    %c0_14 = arith.constant 0 : index
    %c0_15 = arith.constant 0 : index
    %29 = vector.load %arg8[%c0_14, %c0_15] : memref<1x128xf32, #tpu.memory_space<vmem>>, vector<1x128xf32>
    tpu.vector_store %arg8[%c0_14, %c0_15], %28 {strides = array<i32>} : memref<1x128xf32, #tpu.memory_space<vmem>>, vector<1x128xf32>,
    %c2_i32 = arith.constant 2 : i32
    %30 = arith.cmpi eq, %arg0, %c2_i32 : i32
    %31 = arith.extui %30 : i1 to i32
    %c0_i32_16 = arith.constant 0 : i32
    %32 = arith.cmpi ne, %31, %c0_i32_16 : i32
    scf.if %32 {
      %c0_17 = arith.constant 0 : index
      %c0_18 = arith.constant 0 : index
      %33 = vector.load %arg7[%c0_17, %c0_18] : memref<1x128xf32, #tpu.memory_space<vmem>>, vector<1x128xf32>
      %cst_19 = arith.constant 5.000000e-02 : f32
      %34 = vector.broadcast %cst_19 : f32 to vector<1x128xf32>
      %35 = arith.mulf %33, %34 : vector<1x128xf32>
      %c0_20 = arith.constant 0 : index
      %c0_21 = arith.constant 0 : index
      %36 = vector.load %arg8[%c0_20, %c0_21] : memref<1x128xf32, #tpu.memory_space<vmem>>, vector<1x128xf32>
      %cst_22 = arith.constant 5.000000e-02 : f32
      %37 = vector.broadcast %cst_22 : f32 to vector<1x128xf32>
      %38 = arith.mulf %36, %37 : vector<1x128xf32>
      %39 = arith.mulf %35, %35 : vector<1x128xf32>
      %40 = arith.subf %38, %39 : vector<1x128xf32>
      %cst_23 = arith.constant 0.000000e+00 : f32
      %41 = vector.broadcast %cst_23 : f32 to vector<1x128xf32>
      %42 = arith.maximumf %40, %41 : vector<1x128xf32>
      %cst_24 = arith.constant 9.99999974E-6 : f32
      %43 = vector.broadcast %cst_24 : f32 to vector<1x128xf32>
      %44 = arith.addf %42, %43 : vector<1x128xf32>
      %45 = math.rsqrt %44 : vector<1x128xf32>
      %c0_25 = arith.constant 0 : index
      %c0_26 = arith.constant 0 : index
      %46 = vector.load %arg4[%c0_25, %c0_26] : memref<1x128xf32, #tpu.memory_space<vmem>>, vector<1x128xf32>
      %47 = arith.mulf %46, %45 : vector<1x128xf32>
      %c0_27 = arith.constant 0 : index
      %c0_28 = arith.constant 0 : index
      %48 = vector.load %arg5[%c0_27, %c0_28] : memref<1x128xf32, #tpu.memory_space<vmem>>, vector<1x128xf32>
      %49 = arith.mulf %35, %47 : vector<1x128xf32>
      %50 = arith.subf %48, %49 : vector<1x128xf32>
      %c0_29 = arith.constant 0 : index
      %c0_30 = arith.constant 0 : index
      %51 = vector.load %arg6[%c0_29, %c0_30] : memref<2x128xf32, #tpu.memory_space<vmem>>, vector<1x128xf32>
      tpu.vector_store %arg6[%c0_29, %c0_30], %47 {strides = array<i32>} : memref<2x128xf32, #tpu.memory_space<vmem>>, vector<1x128xf32>,
      %c1 = arith.constant 1 : index
      %c0_31 = arith.constant 0 : index
      %52 = vector.load %arg6[%c1, %c0_31] : memref<2x128xf32, #tpu.memory_space<vmem>>, vector<1x128xf32>
      tpu.vector_store %arg6[%c1, %c0_31], %50 {strides = array<i32>} : memref<2x128xf32, #tpu.memory_space<vmem>>, vector<1x128xf32>,
    } else {
    }
    return
  }
  func.func @transform_0(%arg0: i32) -> (i32, i32) {
    %c0_i32 = arith.constant 0 : i32
    %c0_i32_0 = arith.constant 0 : i32
    return %arg0, %c0_i32 : i32, i32
  }
  func.func @transform_1(%arg0: i32) -> (i32, i32) {
    %c0_i32 = arith.constant 0 : i32
    %c0_i32_0 = arith.constant 0 : i32
    %c0_i32_1 = arith.constant 0 : i32
    return %c0_i32, %c0_i32_0 : i32, i32
  }
  func.func @transform_2(%arg0: i32) -> (i32, i32) {
    %c0_i32 = arith.constant 0 : i32
    %c0_i32_0 = arith.constant 0 : i32
    %c0_i32_1 = arith.constant 0 : i32
    return %c0_i32, %c0_i32_0 : i32, i32
  }
  func.func @transform_3(%arg0: i32) -> (i32, i32) {
    %c0_i32 = arith.constant 0 : i32
    %c0_i32_0 = arith.constant 0 : i32
    %c0_i32_1 = arith.constant 0 : i32
    return %c0_i32, %c0_i32_0 : i32, i32
  }
  func.func @transform_4(%arg0: i32) -> (i32, i32) {
    %c0_i32 = arith.constant 0 : i32
    %c0_i32_0 = arith.constant 0 : i32
    %c0_i32_1 = arith.constant 0 : i32
    return %c0_i32, %c0_i32_0 : i32, i32
  }
  func.func @transform_5(%arg0: i32) -> (i32, i32) {
    %c0_i32 = arith.constant 0 : i32
    %c0_i32_0 = arith.constant 0 : i32
    %c0_i32_1 = arith.constant 0 : i32
    return %c0_i32, %c0_i32_0 : i32, i32
  }
}

</mosaic_0001>

<llo_original>
// kernel: tpu_custom_call.1
$region0: #{tpu_custom_call.1}
  #allocation0 [shape = 'u32[]', space=smem, size = 0x4, offset = 0x4, fixed_abs, tag = 'smem constant byte address 0x4 - core index']
  #allocation1 [shape = 'u32[72,128]{1,0:T(1,128)}', space=vmem, size = 0x9000, scoped, tag = 'internal scratch']
  #allocation2 [shape = 'f32[1,128]{1,0:T(1,128)}', space=vmem, size = 0x200, scoped, tag = 'scratch operand']
  #allocation3 [shape = 'f32[1,128]{1,0:T(1,128)}', space=vmem, size = 0x200, scoped, tag = 'scratch operand']
  %s0 = inlined_call_operand.hbm [shape: bf16[24,128], index: 0, kind: input, shape index: {}]
  %s1 = inlined_call_operand.hbm [shape: bf16[128,128], index: 1, kind: input, shape index: {}]
  %s2 = inlined_call_operand.vmem [shape: f32[1,128], index: 2, kind: input, shape index: {}]
  %s3 = inlined_call_operand.vmem [shape: f32[1,128], index: 3, kind: input, shape index: {}]
  %s4 = inlined_call_operand.vmem [shape: f32[1,128], index: 4, kind: input, shape index: {}]
  %s5 = inlined_call_operand.hbm [shape: f32[2,128], index: 5, kind: output, shape index: {}]
  %s6 = sld [smem:[#allocation0]]
  $region69: #{tpu_custom_call.1} parent=0
    _
  %s8 = ssub.s32 1, %s6
  %s9 = scalar_select 0, %s8, %s6
  $region1: #{tpu_custom_call.1} parent=0
    #allocation4 [shape = 'u8[4096]{0}', space=vmem, size = 0x1000, scoped, tag = 'input window, operand 0']
    #allocation5 [shape = 's32[2]{0}', space=sflag, size = 0x8, scoped, tag = 'scoped memory for tpu_custom_call.1']
    #allocation6 [shape = 's32[2]{0}', space=sflag, size = 0x8, scoped, tag = 'scoped memory for tpu_custom_call.1']
    #allocation7 [shape = 'u8[32768]{0}', space=vmem, size = 0x8000, scoped, tag = 'input window, operand 1, single buffered']
    #allocation8 [shape = 's32[1]{0}', space=sflag, size = 0x4, scoped, tag = 'scoped memory for tpu_custom_call.1']
    #allocation9 [shape = 'u8[1024]{0}', space=vmem, size = 0x400, scoped, tag = 'output window, operand 0, single buffered']
    %10 = vsyncpa [#allocation5], 0
    %s11 = scalar_lea.sflag [#allocation5], 1
    %12 = vsyncpa %s11, 0
    %13 = vsyncpa [#allocation8], 0
    %14 = vsyncpa [#allocation6], 0
    loop: start=0, step=1, limit=5
    $region2: #{tpu_custom_call.1} parent=1 // loop_pre_header
      _
    $region3: #{tpu_custom_call.1} parent=1 // loop_header
      %s16 = sphi 0, %s20
      %p17 = scmp.ge.s32.totalorder %s16, 5
      %s26 = sphi 0, %s28
      %s29 = sphi 0, %s26
      %s30 = sphi 0, %s29
      %s46 = sphi 0, %s30
      %s50 = sphi 0, %s50
      %s52 = sphi 0, %s50
      %s53 = sphi 0, %s52
      %s67 = sphi 0, %s53
      %s71 = sphi 0, %s71
      %s73 = sphi 0, %s71
      %s74 = sphi 0, %s73
      %s88 = sphi 0, %s74
      %s92 = sphi 0, %s92
      %s94 = sphi 0, %s92
      %s95 = sphi 0, %s94
      %s109 = sphi 0, %s95
      %s113 = sphi 0, %s113
      %s115 = sphi 0, %s113
      %s116 = sphi 0, %s115
      %s130 = sphi 0, %s116
      %s134 = sphi 0, %s134
      %s136 = sphi 0, %s134
      %s137 = sphi 0, %s136
      %s151 = sphi 0, %s137
    $region4: #{tpu_custom_call.1} parent=1 // loop_header_branch
      %19 = sbr.rel (%p17) target = $region8
    $region5: #{tpu_custom_call.1} parent=1 // loop_body
      %s21 = ssub.s32 %s16, 1
      %s22 = ssub.s32 %s16, 2
      %s23 = sadd.s32 %s16, 1
      %s24 = ssub.s32 %s16, %s23
      %p25 = scmp.eq.s32.totalorder %s24, 0
      %s27 = sadd.s32 %s26, 1
      %s28 = scalar_select %p25, %s26, %s27
      %p31 = pneg %p25
      %p32 = scmp.eq.s32.totalorder %s16, 2
      %p33 = por %p31, %p32
      %p34 = scmp.ne.s32.totalorder %s26, %s29
      %p35 = scmp.eq.s32.totalorder %s16, 0
      %p36 = por %p34, %p35
      %p37 = scmp.ne.s32.totalorder %s26, %s29
      %p38 = scmp.eq.s32.totalorder %s21, 2
      %p39 = por %p37, %p38
      %p40 = scmp.ne.s32.totalorder %s29, %s30
      %p41 = scmp.eq.s32.totalorder %s21, 0
      %p42 = por %p40, %p41
      %p43 = scmp.ne.s32.totalorder %s29, %s30
      %p44 = scmp.eq.s32.totalorder %s22, 2
      %p45 = por %p43, %p44
      %p47 = scmp.ne.s32.totalorder %s30, %s46
      %p48 = scmp.eq.s32.totalorder %s22, 0
      %p49 = por %p47, %p48
      %s51 = sadd.s32 %s50, 1
      %p54 = scmp.eq.s32.totalorder %s16, 2
      %p55 = scmp.ne.s32.totalorder %s50, %s52
      %p56 = scmp.eq.s32.totalorder %s16, 0
      %p57 = por %p55, %p56
      %p58 = scmp.ne.s32.totalorder %s50, %s52
      %p59 = scmp.eq.s32.totalorder %s21, 2
      %p60 = por %p58, %p59
      %p61 = scmp.ne.s32.totalorder %s52, %s53
      %p62 = scmp.eq.s32.totalorder %s21, 0
      %p63 = por %p61, %p62
      %p64 = scmp.ne.s32.totalorder %s52, %s53
      %p65 = scmp.eq.s32.totalorder %s22, 2
      %p66 = por %p64, %p65
      %p68 = scmp.ne.s32.totalorder %s53, %s67
      %p69 = scmp.eq.s32.totalorder %s22, 0
      %p70 = por %p68, %p69
      %s72 = sadd.s32 %s71, 1
      %p75 = scmp.eq.s32.totalorder %s16, 2
      %p76 = scmp.ne.s32.totalorder %s71, %s73
      %p77 = scmp.eq.s32.totalorder %s16, 0
      %p78 = por %p76, %p77
      %p79 = scmp.ne.s32.totalorder %s71, %s73
      %p80 = scmp.eq.s32.totalorder %s21, 2
      %p81 = por %p79, %p80
      %p82 = scmp.ne.s32.totalorder %s73, %s74
      %p83 = scmp.eq.s32.totalorder %s21, 0
      %p84 = por %p82, %p83
      %p85 = scmp.ne.s32.totalorder %s73, %s74
      %p86 = scmp.eq.s32.totalorder %s22, 2
      %p87 = por %p85, %p86
      %p89 = scmp.ne.s32.totalorder %s74, %s88
      %p90 = scmp.eq.s32.totalorder %s22, 0
      %p91 = por %p89, %p90
      %s93 = sadd.s32 %s92, 1
      %p96 = scmp.eq.s32.totalorder %s16, 2
      %p97 = scmp.ne.s32.totalorder %s92, %s94
      %p98 = scmp.eq.s32.totalorder %s16, 0
      %p99 = por %p97, %p98
      %p100 = scmp.ne.s32.totalorder %s92, %s94
      %p101 = scmp.eq.s32.totalorder %s21, 2
      %p102 = por %p100, %p101
      %p103 = scmp.ne.s32.totalorder %s94, %s95
      %p104 = scmp.eq.s32.totalorder %s21, 0
      %p105 = por %p103, %p104
      %p106 = scmp.ne.s32.totalorder %s94, %s95
      %p107 = scmp.eq.s32.totalorder %s22, 2
      %p108 = por %p106, %p107
      %p110 = scmp.ne.s32.totalorder %s95, %s109
      %p111 = scmp.eq.s32.totalorder %s22, 0
      %p112 = por %p110, %p111
      %s114 = sadd.s32 %s113, 1
      %p117 = scmp.eq.s32.totalorder %s16, 2
      %p118 = scmp.ne.s32.totalorder %s113, %s115
      %p119 = scmp.eq.s32.totalorder %s16, 0
      %p120 = por %p118, %p119
      %p121 = scmp.ne.s32.totalorder %s113, %s115
      %p122 = scmp.eq.s32.totalorder %s21, 2
      %p123 = por %p121, %p122
      %p124 = scmp.ne.s32.totalorder %s115, %s116
      %p125 = scmp.eq.s32.totalorder %s21, 0
      %p126 = por %p124, %p125
      %p127 = scmp.ne.s32.totalorder %s115, %s116
      %p128 = scmp.eq.s32.totalorder %s22, 2
      %p129 = por %p127, %p128
      %p131 = scmp.ne.s32.totalorder %s116, %s130
      %p132 = scmp.eq.s32.totalorder %s22, 0
      %p133 = por %p131, %p132
      %s135 = sadd.s32 %s134, 1
      %p138 = scmp.eq.s32.totalorder %s16, 2
      %p139 = scmp.ne.s32.totalorder %s134, %s136
      %p140 = scmp.eq.s32.totalorder %s16, 0
      %p141 = por %p139, %p140
      %p142 = scmp.ne.s32.totalorder %s134, %s136
      %p143 = scmp.eq.s32.totalorder %s21, 2
      %p144 = por %p142, %p143
      %p145 = scmp.ne.s32.totalorder %s136, %s137
      %p146 = scmp.eq.s32.totalorder %s21, 0
      %p147 = por %p145, %p146
      %p148 = scmp.ne.s32.totalorder %s136, %s137
      %p149 = scmp.eq.s32.totalorder %s22, 2
      %p150 = por %p148, %p149
      %p152 = scmp.ne.s32.totalorder %s137, %s151
      %p153 = scmp.eq.s32.totalorder %s22, 0
      %p154 = por %p152, %p153
      %p155 = scmp.le.s32.totalorder 1, %s16
      %p156 = scmp.lt.s32.totalorder %s16, 4
      %p157 = pnand %p155, %p156
      %p158 = pneg %p157
      // Predicated region
      $region9: #{tpu_custom_call.1} parent=5 // pred_check
        _
      $region10: #{tpu_custom_call.1} parent=5 // pred_check_branch
        %160 = sbr.rel (%p157) target = $region12
      $region11: #{tpu_custom_call.1} parent=5 // pred_region
        %s161 = ssub.s32 %s16, 1
        // Predicated region
        $region13: #{tpu_custom_call.1} parent=11 // pred_check
          %p162 = pneg %p63
        $region14: #{tpu_custom_call.1} parent=11 // pred_check_branch
          %164 = sbr.rel (%p162) target = $region16
        $region15: #{tpu_custom_call.1} parent=11 // pred_region
          %166 = vsyncadd [#allocation8], 0
          %s167 = sshll.u32 %s1, 4
          %s168 = int_to_ptr.hbm [resolvable:$true] %s167
          %s169 = sshll.u32 [#allocation7], 4
          %s170 = int_to_ptr.vmem [resolvable:$true] %s169
          %175 = dma.hbm_to_vmem [thread:$0]  %s168, 1024, %s170, [#allocation8], 64, 64, 4
        $region16: #{tpu_custom_call.1} parent=11 // pred_fallthru
          _
        // Predicated region
        $region17: #{tpu_custom_call.1} parent=11 // pred_check
          %p176 = pneg %p84
        $region18: #{tpu_custom_call.1} parent=11 // pred_check_branch
          %178 = sbr.rel (%p176) target = $region20
        $region19: #{tpu_custom_call.1} parent=11 // pred_region
          _
        $region20: #{tpu_custom_call.1} parent=11 // pred_fallthru
          _
        // Predicated region
        $region21: #{tpu_custom_call.1} parent=11 // pred_check
          %p179 = pneg %p105
        $region22: #{tpu_custom_call.1} parent=11 // pred_check_branch
          %181 = sbr.rel (%p179) target = $region24
        $region23: #{tpu_custom_call.1} parent=11 // pred_region
          _
        $region24: #{tpu_custom_call.1} parent=11 // pred_fallthru
          _
        // Predicated region
        $region25: #{tpu_custom_call.1} parent=11 // pred_check
          %p182 = pneg %p126
        $region26: #{tpu_custom_call.1} parent=11 // pred_check_branch
          %184 = sbr.rel (%p182) target = $region28
        $region27: #{tpu_custom_call.1} parent=11 // pred_region
          _
        $region28: #{tpu_custom_call.1} parent=11 // pred_fallthru
          _
      $region12: #{tpu_custom_call.1} parent=5 // pred_fallthru
        _
      %p185 = scmp.lt.s32.totalorder %s16, 3
      // Predicated region
      $region29: #{tpu_custom_call.1} parent=5 // pred_check
        %p186 = pneg %p185
      $region30: #{tpu_custom_call.1} parent=5 // pred_check_branch
        %188 = sbr.rel (%p186) target = $region32
      $region31: #{tpu_custom_call.1} parent=5 // pred_region
        // Predicated region
        $region33: #{tpu_custom_call.1} parent=31 // pred_check
          %p189 = pneg %p36
        $region34: #{tpu_custom_call.1} parent=31 // pred_check_branch
          %191 = sbr.rel (%p189) target = $region36
        $region35: #{tpu_custom_call.1} parent=31 // pred_region
          %s192 = sand.u32 %s26, 1
          %s193 = scalar_lea.sflag [#allocation5], %s192
          %s194 = sand.u32 %s26, 1
          %s195 = smul.addr %s194, 4
          %s196 = scalar_lea.vmem [#allocation4], %s195
          %198 = vsyncadd %s193, 0
          %s199 = smul.addr %s16, 4
          %s200 = scalar_lea.hbm %s0, %s199
          %s202 = sshll.u32 %s200, 4
          %s203 = int_to_ptr.hbm [resolvable:$true] %s202
          %s204 = sshll.u32 %s196, 4
          %s205 = int_to_ptr.vmem [resolvable:$true] %s204
          %207 = dma.hbm_to_vmem [thread:$0]  %s203, 64, %s205, %s193
        $region36: #{tpu_custom_call.1} parent=31 // pred_fallthru
          _
      $region32: #{tpu_custom_call.1} parent=5 // pred_fallthru
        _
      %p208 = scmp.le.s32.totalorder 1, %s16
      %p209 = scmp.lt.s32.totalorder %s16, 4
      %p210 = pnand %p208, %p209
      %p211 = pneg %p210
      // Predicated region
      $region37: #{tpu_custom_call.1} parent=5 // pred_check
        _
      $region38: #{tpu_custom_call.1} parent=5 // pred_check_branch
        %213 = sbr.rel (%p210) target = $region40
      $region39: #{tpu_custom_call.1} parent=5 // pred_region
        %s214 = ssub.s32 %s16, 1
        %s215 = sand.u32 %s29, 1
        %s216 = scalar_lea.sflag [#allocation5], %s215
        %s217 = sand.u32 %s29, 1
        %s218 = smul.addr %s217, 4
        %s219 = scalar_lea.vmem [#allocation4], %s218
        // Predicated region
        $region41: #{tpu_custom_call.1} parent=39 // pred_check
          %p220 = pneg %p42
        $region42: #{tpu_custom_call.1} parent=39 // pred_check_branch
          %222 = sbr.rel (%p220) target = $region44
        $region43: #{tpu_custom_call.1} parent=39 // pred_region
          %224 = dma.done %s216, 64
        $region44: #{tpu_custom_call.1} parent=39 // pred_fallthru
          _
        // Predicated region
        $region45: #{tpu_custom_call.1} parent=39 // pred_check
          %p225 = pneg %p63
        $region46: #{tpu_custom_call.1} parent=39 // pred_check_branch
          %227 = sbr.rel (%p225) target = $region48
        $region47: #{tpu_custom_call.1} parent=39 // pred_region
          %229 = dma.done [#allocation8], 1024
        $region48: #{tpu_custom_call.1} parent=39 // pred_fallthru
          _
        %s230 = sand.u32 %s29, 1
        %s231 = scalar_lea.sflag [#allocation5], %s230
        %s232 = sand.u32 %s29, 1
        %s233 = smul.addr %s232, 4
        %s234 = scalar_lea.vmem [#allocation4], %s233
        %p235 = pneg %p42
        %p236 = pneg %p39
        %p237 = pneg %p63
        %p238 = pneg %p60
        %p239 = pneg %p84
        %p240 = pneg %p81
        %p241 = pneg %p105
        %p242 = pneg %p102
        %p243 = pneg %p126
        %p244 = pneg %p123
        %p245 = pneg %p147
        %p246 = pneg %p144
        %p247 = scmp.eq.s32.totalorder %s21, 0
        // Predicated region
        $region49: #{tpu_custom_call.1} parent=39 // pred_check
          %p248 = pneg %p247
        $region50: #{tpu_custom_call.1} parent=39 // pred_check_branch
          %250 = sbr.rel (%p248) target = $region52
        $region51: #{tpu_custom_call.1} parent=39 // pred_region
          %251 = vst [vmem:[#allocation2] sm:$0x1] 0.0
          %252 = vst [vmem:[#allocation3] sm:$0x1] 0.0
        $region52: #{tpu_custom_call.1} parent=39 // pred_fallthru
          _
        %v253 = vld [vmem:[%s219] sm:$0xf]
        %v254 = vld [vmem:[#allocation7] sm:$0xf]
        %v255 = vld [vmem:[#allocation7 + $0x4] sm:$0xf]
        %v256 = vld [vmem:[#allocation7 + $0x8] sm:$0xf]
        %v257 = vld [vmem:[#allocation7 + $0xc] sm:$0xf]
        %v258 = vld [vmem:[#allocation7 + $0x10] sm:$0xf]
        %v259 = vld [vmem:[#allocation7 + $0x14] sm:$0xf]
        %v260 = vld [vmem:[#allocation7 + $0x18] sm:$0xf]
        %v261 = vld [vmem:[#allocation7 + $0x1c] sm:$0xf]
        %v262 = vld [vmem:[#allocation7 + $0x20] sm:$0xf]
        %v263 = vld [vmem:[#allocation7 + $0x24] sm:$0xf]
        %v264 = vld [vmem:[#allocation7 + $0x28] sm:$0xf]
        %v265 = vld [vmem:[#allocation7 + $0x2c] sm:$0xf]
        %v266 = vld [vmem:[#allocation7 + $0x30] sm:$0xf]
        %v267 = vld [vmem:[#allocation7 + $0x34] sm:$0xf]
        %v268 = vld [vmem:[#allocation7 + $0x38] sm:$0xf]
        %v269 = vld [vmem:[#allocation7 + $0x3c] sm:$0xf]
        %v270 = vld [vmem:[%s2] sm:$0x1]
        %v272 = vperm.slane %v270, 0
        %v290 = vunpack.c.l.b16 %v254
        %v291 = vunpack.c.l.b16 %v255
        %v292 = vunpack.c.l.b16 %v256
        %v293 = vunpack.c.l.b16 %v257
        %v294 = vunpack.c.l.b16 %v258
        %v295 = vunpack.c.l.b16 %v259
        %v296 = vunpack.c.l.b16 %v260
        %v297 = vunpack.c.l.b16 %v261
        %v298 = vunpack.c.l.b16 %v262
        %v299 = vunpack.c.l.b16 %v263
        %v300 = vunpack.c.l.b16 %v264
        %v301 = vunpack.c.l.b16 %v265
        %v302 = vunpack.c.l.b16 %v266
        %v303 = vunpack.c.l.b16 %v267
        %v304 = vunpack.c.l.b16 %v268
        %v305 = vunpack.c.l.b16 %v269
        %v306 = vpack.c.b16 %v291, %v290
        %v307 = vpack.c.b16 %v293, %v292
        %v308 = vpack.c.b16 %v295, %v294
        %v309 = vpack.c.b16 %v297, %v296
        %v310 = vpack.c.b16 %v299, %v298
        %v311 = vpack.c.b16 %v301, %v300
        %v312 = vpack.c.b16 %v303, %v302
        %v313 = vpack.c.b16 %v305, %v304
        %322 = vmatpush.bf16.msra.mxu0 %v313
        %323 = vmatpush.bf16.msra.mxu0 %v312
        %324 = vmatpush.bf16.msra.mxu0 %v311
        %325 = vmatpush.bf16.msra.mxu0 %v310
        %326 = vmatpush.bf16.msra.mxu0 %v309
        %327 = vmatpush.bf16.msra.mxu0 %v308
        %328 = vmatpush.bf16.msra.mxu0 %v307
        %329 = vmatpush.bf16.msra.mxu0 %v306
        %330 = vmatmul.bf16.gmra.mxu0 %v253
        %v331 = vpop.f32.mrf.mxu0
        %v332 = vadd.f32 %v272, %v331
        %v333 = vpop.f32.mrf.mxu0
        %334 = vdwg.mxu0
        %s335 = smul.u32 %s21, 8
        %v336 = vlaneseq
        %v337 = vshrl.u32 %v336, 7
        %v338 = vstv %s335
        %v339 = vadd.s32 %v338, %v337
        %vm340 = vcmp.lt.s32.totalorder %v339, 20
        %v341 = vsel %vm340, 1, 0
        %v342 = vcvt.s32.f32 %v341
        %v343 = vmul.f32 %v332, %v342
        %v344 = vld [vmem:[#allocation2] sm:$0x1]
        %v345 = vrot.slane %v343, 4
        %v346 = vadd.f32 %v343, %v345
        %v347 = vrot.slane %v346, 2
        %v348 = vadd.f32 %v346, %v347
        %v349 = vrot.slane %v348, 1
        %v350 = vadd.f32 %v348, %v349
        %v351 = vadd.f32 %v344, %v350
        %352 = vst [vmem:[#allocation2] sm:$0x1] %v351
        %v353 = vld [vmem:[#allocation3] sm:$0x1]
        %v354 = vmul.f32 %v343, %v343
        %v355 = vrot.slane %v354, 4
        %v356 = vadd.f32 %v354, %v355
        %v357 = vrot.slane %v356, 2
        %v358 = vadd.f32 %v356, %v357
        %v359 = vrot.slane %v358, 1
        %v360 = vadd.f32 %v358, %v359
        %v361 = vadd.f32 %v353, %v360
        %362 = vst [vmem:[#allocation3] sm:$0x1] %v361
        %p363 = scmp.eq.s32.totalorder %s21, 2
        // Predicated region
        $region53: #{tpu_custom_call.1} parent=39 // pred_check
          %p364 = pneg %p363
        $region54: #{tpu_custom_call.1} parent=39 // pred_check_branch
          %366 = sbr.rel (%p364) target = $region56
        $region55: #{tpu_custom_call.1} parent=39 // pred_region
          %v367 = vld [vmem:[#allocation2] sm:$0x1]
          %v368 = vmul.f32 %v367, 0.05
          %v369 = vld [vmem:[#allocation3] sm:$0x1]
          %v370 = vmul.f32 %v369, 0.05
          %v371 = vmul.f32 %v368, %v368
          %v372 = vsub.f32 %v370, %v371
          %v373 = vmax.f32 %v372, 0.0
          %v374 = vadd.f32 %v373, 1e-05
          %v375 = vrsqrt.pop %v374
          %v376 = vmul.f32 %v375, %v374
          %v377 = vmul.f32 %v376, %v375
          %v378 = vmul.f32 0.5, %v377
          %v379 = vsub.f32 1.5, %v378
          %v380 = vmul.f32 %v375, %v379
          %vm381 = vweird.f32 %v374
          %vm382 = vweird.f32 %v375
          %vm383 = vmor %vm381, %vm382
          %v384 = vsel %vm383, %v375, %v380
          %v385 = vld [vmem:[%s3] sm:$0x1]
          %v386 = vmul.f32 %v385, %v384
          %v387 = vld [vmem:[%s4] sm:$0x1]
          %v388 = vmul.f32 %v368, %v386
          %v389 = vsub.f32 %v387, %v388
          %390 = vst [vmem:[#allocation9] sm:$0x1] %v386
          %391 = vst [vmem:[#allocation9 + $0x1] sm:$0x1] %v389
        $region56: #{tpu_custom_call.1} parent=39 // pred_fallthru
          _
        // Predicated region
        $region57: #{tpu_custom_call.1} parent=39 // pred_check
          %p392 = pneg %p144
        $region58: #{tpu_custom_call.1} parent=39 // pred_check_branch
          %394 = sbr.rel (%p392) target = $region60
        $region59: #{tpu_custom_call.1} parent=39 // pred_region
          %396 = vsyncadd [#allocation6], 0
          %s398 = sshll.u32 [#allocation9], 4
          %s399 = int_to_ptr.vmem [resolvable:$true] %s398
          %s400 = sshll.u32 %s5, 4
          %s401 = int_to_ptr.hbm [resolvable:$true] %s400
          %403 = dma.vmem_to_hbm [thread:$0]  %s399, 32, %s401, [#allocation6]
        $region60: #{tpu_custom_call.1} parent=39 // pred_fallthru
          _
        // Predicated region
        $region61: #{tpu_custom_call.1} parent=39 // pred_check
          %p404 = pneg %p144
        $region62: #{tpu_custom_call.1} parent=39 // pred_check_branch
          %406 = sbr.rel (%p404) target = $region64
        $region63: #{tpu_custom_call.1} parent=39 // pred_region
          %408 = dma.done [#allocation6], 32
        $region64: #{tpu_custom_call.1} parent=39 // pred_fallthru
          _
      $region40: #{tpu_custom_call.1} parent=5 // pred_fallthru
        _
      %p409 = scmp.le.s32.totalorder 2, %s16
      // Predicated region
      $region65: #{tpu_custom_call.1} parent=5 // pred_check
        %p410 = pneg %p409
      $region66: #{tpu_custom_call.1} parent=5 // pred_check_branch
        %412 = sbr.rel (%p410) target = $region68
      $region67: #{tpu_custom_call.1} parent=5 // pred_region
        %s413 = ssub.s32 %s16, 2
      $region68: #{tpu_custom_call.1} parent=5 // pred_fallthru
        _
    $region6: #{tpu_custom_call.1} parent=1 // loop_footer
      %s20 = sadd.s32 1, %s16
    $region7: #{tpu_custom_call.1} parent=1 // loop_footer_branch
      %15 = sbr.rel target = $region3
    $region8: #{tpu_custom_call.1} parent=1 // loop_exit
      _
    %414 = vsyncpa [#allocation5], 1
    %s415 = scalar_lea.sflag [#allocation5], 1
    %416 = vsyncpa %s415, 1
    %417 = vsyncpa [#allocation8], 1
    %418 = vsyncpa [#allocation6], 1
    %s419 = scalar_lea.sflag [#allocation6], 1
    %420 = vsyncpa %s419, 1

</llo_original>
